<compile_context>
chip_gen: v5e
topology: v5e:2x2
jax: 0.10.0
libtpu: 0.0.40
codegen_flags: <defaults>
</compile_context>

<pallas_src>
import functools

import jax
import jax.numpy as jnp
from jax.experimental import pallas as pl
from jax.experimental.pallas import tpu as pltpu


# --------------------------------------------------------------------------
# Kernel
# --------------------------------------------------------------------------
def _nll_partial_kernel(pred_ref, tgt_ref, out_ref, *, n_rows):
    """One grid step: partial sum of the selected log-probs for this row tile.

    pred_ref : (TILE, C)  log-probabilities, native dtype (f32 or bf16)
    tgt_ref  : (TILE, 1)  int32 class indices
    out_ref  : (1, 128)   f32; per-tile partial sum broadcast across lanes
    """
    i = pl.program_id(0)
    pred = pred_ref[...]                      # native dtype: no full-tile upcast
    tgt = tgt_ref[...]                        # (TILE, 1) int32
    tile, c = pred.shape

    # Fold the padded rows of the last (partial) block into the target: rows at
    # or past n_rows get the sentinel -1, which never matches any class index.
    row_ids = jax.lax.broadcasted_iota(jnp.int32, (tile, 1), 0)
    tgt_eff = jnp.where(row_ids + i * tile < n_rows, tgt, -1)

    # One-hot gather mask over the dominant (TILE, C) tile: iota + compare only.
    col_ids = jax.lax.broadcasted_iota(jnp.int32, (tile, c), 1)
    sel = col_ids == tgt_eff

    # True select (never mask-multiply): garbage/NaN in the out-of-bounds tail
    # of the last pred block can never propagate.
    picked = jnp.where(sel, pred, jnp.zeros_like(pred))

    # Lane-axis reduce first, in the native dtype (exact: <=1 nonzero per row
    # among zeros), then cast only the (TILE, 1) row sums to f32 (XLU reduce,
    # tiny cast) before the final accumulation.
    row_sums = jnp.sum(picked, axis=-1, keepdims=True).astype(jnp.float32)
    partial = jnp.sum(row_sums)

    # Lane-dense store of this tile's partial (independent across grid steps).
    out_ref[...] = jnp.full(out_ref.shape, partial, dtype=jnp.float32)


# --------------------------------------------------------------------------
# Generation-aware sizing helpers (safe fallbacks if introspection fails)
# --------------------------------------------------------------------------
def _tpu_info():
    try:
        return pltpu.get_tpu_info()
    except Exception:
        return None


def _vmem_capacity_bytes():
    info = _tpu_info()
    cap = getattr(info, "vmem_capacity_bytes", None) if info is not None else None
    try:
        cap = int(cap) if cap else None
    except Exception:
        cap = None
    # Unknown -> assume the smallest generation (v7x, 64 MiB) so we never OOM.
    return cap if cap else 64 * 1024 * 1024


def _is_v7x():
    info = _tpu_info()
    if info is None:
        return False
    ver = getattr(info, "chip_version", None)
    return ver is not None and "7" in str(ver)


# --------------------------------------------------------------------------
# Wrapper
# --------------------------------------------------------------------------
def attention_loss(pred, target, *, tile_rows=None):
    """JAX/Pallas equivalent of AttentionLoss.forward.

    pred      : (N, C) float log-probabilities, N = (T+1) * B  (f32 or bf16)
    target    : (B, T) integer class indices
    tile_rows : optional row-tile override (testing); default derives the tile
                from a generation-aware, lane-padding-aware VMEM byte budget.
    returns   : scalar float32 loss (NLLLoss, reduction='mean', no weights)
    """
    b = target.shape[0]
    # addition = ones((B, 1)).long(); cat along dim=1; transpose; flatten.
    addition = jnp.ones((b, 1), dtype=target.dtype)
    tgt = jnp.concatenate([target, addition], axis=1)                 # (B, T+1)
    tgt_flat = jnp.transpose(tgt).reshape(-1).astype(jnp.int32)       # (N,) time-major
    n, c = pred.shape
    assert tgt_flat.shape[0] == n, "pred rows must equal (T+1)*B"
    tgt2d = tgt_flat.reshape(n, 1)                                    # (N, 1) int32

    # --- VMEM-budget-driven row tile (lane-padded widths) -----------------
    itemsize = pred.dtype.itemsize
    padded_c = ((c + 127) // 128) * 128
    pred_row_bytes = padded_c * itemsize        # real VMEM bytes per pred row
    tgt_row_bytes = 128 * 4                     # (tile,1) int32 pads lanes to 128

    vmem_cap = _vmem_capacity_bytes()
    if vmem_cap >= 96 * 1024 * 1024:            # v5e / v6e: 128 MiB physical VMEM
        buffer_budget = 48 * 1024 * 1024
        vmem_limit = 64 * 1024 * 1024
    else:                                        # v7x: 64 MiB physical VMEM
        buffer_budget = 16 * 1024 * 1024
        vmem_limit = 32 * 1024 * 1024

    per_row_pipelined = 2 * pred_row_bytes + 2 * tgt_row_bytes   # double-buffered
    tile = min(
        max(1, buffer_budget // per_row_pipelined),              # fit total budget
        max(1, (4 * 1024 * 1024) // pred_row_bytes),             # ~4 MiB pred block
        n,
    )
    if tile_rows is not None:
        tile = min(tile, int(tile_rows))
    # Align to the dtype's sublane packing (f32:8, bf16:16, int8/fp8:32).
    sublane = max(8, 32 // max(1, itemsize))
    if tile < n:
        tile = max(sublane, (tile // sublane) * sublane)
        tile = min(tile, n)                      # block == full dim: layout-legal
    num_tiles = pl.cdiv(n, tile)

    # --- Block specs -------------------------------------------------------
    pred_block_bytes = tile * pred_row_bytes
    use_triple = num_tiles >= 3 and pred_block_bytes <= 512 * 1024
    if use_triple:
        # Small-block streaming: a third buffer hides DMA issue latency.
        pred_spec = pl.BlockSpec((tile, c), lambda i: (i, 0),
                                 pipeline_mode=pl.Buffered(3))
        tgt_spec = pl.BlockSpec((tile, 1), lambda i: (i, 0),
                                pipeline_mode=pl.Buffered(3))
    else:
        pred_spec = pl.BlockSpec((tile, c), lambda i: (i, 0))
        tgt_spec = pl.BlockSpec((tile, 1), lambda i: (i, 0))

    # --- Grid semantics: real 2-TC sharding on v7x, plain parallel otherwise.
    core_parallel = getattr(pltpu, "CORE_PARALLEL", None)
    if core_parallel is not None and num_tiles >= 2 and _is_v7x():
        dim_sem = (core_parallel,)
    else:
        dim_sem = ("parallel",)

    partials = pl.pallas_call(
        functools.partial(_nll_partial_kernel, n_rows=n),
        out_shape=jax.ShapeDtypeStruct((num_tiles, 128), jnp.float32),
        grid=(num_tiles,),
        in_specs=[pred_spec, tgt_spec],
        out_specs=pl.BlockSpec((1, 128), lambda i: (i, 0)),
        compiler_params=pltpu.CompilerParams(
            dimension_semantics=dim_sem,
            vmem_limit_bytes=vmem_limit,
        ),
    )(pred, tgt2d)

    # Epilogue (once, outside the kernel steady state): sum tiles, negate, mean.
    return -jnp.sum(partials[:, 0]) / jnp.float32(n)


if __name__ == "__main__":
    # Small shapes consistent with the forward pass:
    #   B = 2 sequences, T = 8 target steps, C = 32 classes.
    #   pred has N = (T + 1) * B = 18 rows of log-probabilities.
    B, T, C = 2, 8, 32
    N = (T + 1) * B

    key = jax.random.PRNGKey(0)
    k_logits, k_tgt = jax.random.split(key)

    logits = jax.random.normal(k_logits, (N, C), dtype=jnp.float32)
    pred = jax.nn.log_softmax(logits, axis=-1)          # NLLLoss expects log-probs
    target = jax.random.randint(k_tgt, (B, T), 0, C, dtype=jnp.int32)

    # Pure-JAX reference of the same semantics.
    addition = jnp.ones((B, 1), dtype=target.dtype)
    tgt_flat = jnp.transpose(jnp.concatenate([target, addition], axis=1)).reshape(-1)
    ref = -jnp.mean(pred[jnp.arange(N), tgt_flat])

    # 1) Default byte-budget tile (single full block at this size).
    loss = attention_loss(pred, target)
    jax.block_until_ready(loss)
    assert jnp.allclose(loss, ref, atol=1e-5, rtol=1e-5), (loss, ref)

    # 2) Multi-tile path: partial (sentinel-masked) last block + Buffered(3).
    loss_tiled = attention_loss(pred, target, tile_rows=8)
    jax.block_until_ready(loss_tiled)
    assert jnp.allclose(loss_tiled, ref, atol=1e-5, rtol=1e-5), (loss_tiled, ref)

    # 3) bf16 pred exercises the native-dtype select + lane-first reduce path
    #    (16-row sublane alignment, masked last block).
    pred_bf16 = pred.astype(jnp.bfloat16)
    ref_bf16 = -jnp.mean(pred_bf16.astype(jnp.float32)[jnp.arange(N), tgt_flat])
    loss_bf16 = attention_loss(pred_bf16, target, tile_rows=16)
    jax.block_until_ready(loss_bf16)
    assert jnp.allclose(loss_bf16, ref_bf16, atol=1e-4, rtol=1e-4), (loss_bf16, ref_bf16)

    print("KERNEL_OK")
</pallas_src>

<mosaic_0001>
module attributes {stable_mosaic.version = 11 : i64} {
  func.func @_nll_partial_kernel(%arg0: i32, %arg1: memref<18x32xf32, #tpu.memory_space<vmem>>, %arg2: memref<18x1xi32, #tpu.memory_space<vmem>>, %arg3: memref<1x128xf32, #tpu.memory_space<vmem>>) attributes {dimension_semantics = [#tpu.dimension_semantics<parallel>], iteration_bounds = array<i64: 1>, scalar_prefetch = 0 : i64, scratch_operands = 0 : i64, tpu.core_type = #tpu.core_type<tc>, window_params = [{transform_indices = @transform_0, window_bounds = array<i64: 18, 32>}, {transform_indices = @transform_1, window_bounds = array<i64: 18, 1>}, {transform_indices = @transform_2, window_bounds = array<i64: 1, 128>}]} {
    %c0 = arith.constant 0 : index
    %c0_0 = arith.constant 0 : index
    %0 = vector.load %arg1[%c0, %c0_0] : memref<18x32xf32, #tpu.memory_space<vmem>>, vector<18x32xf32>
    %c0_1 = arith.constant 0 : index
    %c0_2 = arith.constant 0 : index
    %1 = vector.load %arg2[%c0_1, %c0_2] : memref<18x1xi32, #tpu.memory_space<vmem>>, vector<18x1xi32>
    %2 = tpu.iota {dimensions = array<i32: 0>} : vector<18x1xi32>
    %c18_i32 = arith.constant 18 : i32
    %3 = arith.muli %arg0, %c18_i32 : i32
    %4 = vector.broadcast %3 : i32 to vector<18x1xi32>
    %5 = arith.addi %2, %4 : vector<18x1xi32>
    %c18_i32_3 = arith.constant 18 : i32
    %6 = vector.broadcast %c18_i32_3 : i32 to vector<18x1xi32>
    %7 = arith.cmpi slt, %5, %6 : vector<18x1xi32>
    %c-1_i32 = arith.constant -1 : i32
    %8 = vector.broadcast %c-1_i32 : i32 to vector<18x1xi32>
    %9 = arith.select %7, %1, %8 : vector<18x1xi1>, vector<18x1xi32>
    %10 = tpu.iota {dimensions = array<i32: 1>} : vector<18x32xi32>
    %11 = vector.broadcast %9 : vector<18x1xi32> to vector<18x32xi32>
    %12 = arith.cmpi eq, %10, %11 : vector<18x32xi32>
    %cst = arith.constant 0.000000e+00 : f32
    %13 = vector.broadcast %cst : f32 to vector<18x32xf32>
    %14 = arith.select %12, %0, %13 : vector<18x32xi1>, vector<18x32xf32>
    %cst_4 = arith.constant dense<0.000000e+00> : vector<18xf32>
    %15 = vector.multi_reduction <add>, %14, %cst_4 [1] : vector<18x32xf32> to vector<18xf32>
    %16 = vector.shape_cast %15 : vector<18xf32> to vector<18x1xf32>
    %17 = vector.shape_cast %16 : vector<18x1xf32> to vector<1x18x1xf32>
    %cst_5 = arith.constant dense<0.000000e+00> : vector<1xf32>
    %18 = vector.multi_reduction <add>, %17, %cst_5 [1, 2] : vector<1x18x1xf32> to vector<1xf32>
    %19 = vector.shape_cast %18 : vector<1xf32> to vector<1x1x1xf32>
    %20 = vector.extract %19[0, 0, 0] : f32 from vector<1x1x1xf32>
    %21 = vector.broadcast %20 : f32 to vector<1x128xf32>
    %c0_6 = arith.constant 0 : index
    %c0_7 = arith.constant 0 : index
    %22 = vector.load %arg3[%c0_6, %c0_7] : memref<1x128xf32, #tpu.memory_space<vmem>>, vector<1x128xf32>
    tpu.vector_store %arg3[%c0_6, %c0_7], %21 {strides = array<i32>} : memref<1x128xf32, #tpu.memory_space<vmem>>, vector<1x128xf32>,
    return
  }
  func.func @transform_0(%arg0: i32) -> (i32, i32) {
    %c0_i32 = arith.constant 0 : i32
    %c0_i32_0 = arith.constant 0 : i32
    return %arg0, %c0_i32 : i32, i32
  }
  func.func @transform_1(%arg0: i32) -> (i32, i32) {
    %c0_i32 = arith.constant 0 : i32
    %c0_i32_0 = arith.constant 0 : i32
    return %arg0, %c0_i32 : i32, i32
  }
  func.func @transform_2(%arg0: i32) -> (i32, i32) {
    %c0_i32 = arith.constant 0 : i32
    %c0_i32_0 = arith.constant 0 : i32
    return %arg0, %c0_i32 : i32, i32
  }
}

</mosaic_0001>

<llo_original>
// kernel: tpu_custom_call.1
$region0: #{tpu_custom_call.1}
  #allocation0 [shape = 'u32[]', space=smem, size = 0x4, offset = 0x4, fixed_abs, tag = 'smem constant byte address 0x4 - core index']
  #allocation1 [shape = 'u32[72,128]{1,0:T(1,128)}', space=vmem, size = 0x9000, scoped, tag = 'internal scratch']
  %s0 = inlined_call_operand.vmem [shape: f32[18,32], index: 0, kind: input, shape index: {}]
  %s1 = inlined_call_operand.vmem [shape: s32[18,1], index: 1, kind: input, shape index: {}]
  %s2 = inlined_call_operand.hbm [shape: f32[1,128], index: 2, kind: output, shape index: {}]
  %s3 = sld [smem:[#allocation0]]
  $region18: #{tpu_custom_call.1} parent=0
    _
  %s5 = ssub.s32 1, %s3
  %s6 = scalar_select 0, %s5, %s3
  $region1: #{tpu_custom_call.1} parent=0
    #allocation2 [shape = 'u8[512]{0}', space=vmem, size = 0x400, scoped, tag = 'output window, operand 0, single buffered']
    #allocation3 [shape = 's32[1]{0}', space=sflag, size = 0x4, scoped, tag = 'scoped memory for tpu_custom_call.1']
    %7 = vsyncpa [#allocation3], 0
    // Predicated region
    $region2: #{tpu_custom_call.1} parent=1 // pred_check
      _
    $region3: #{tpu_custom_call.1} parent=1 // pred_check_branch
      %9 = sbr.rel (0) target = $region5
    $region4: #{tpu_custom_call.1} parent=1 // pred_region
      _
    $region5: #{tpu_custom_call.1} parent=1 // pred_fallthru
      _
    // Predicated region
    $region6: #{tpu_custom_call.1} parent=1 // pred_check
      _
    $region7: #{tpu_custom_call.1} parent=1 // pred_check_branch
      %11 = sbr.rel (0) target = $region9
    $region8: #{tpu_custom_call.1} parent=1 // pred_region
      _
    $region9: #{tpu_custom_call.1} parent=1 // pred_fallthru
      _
    %v12 = vld [vmem:[%s0] sm:$0xff]
    %v13 = vld [vmem:[%s0 + $0x8] sm:$0xff]
    %v14 = vld [vmem:[%s0 + $0x10] sm:$0x3]
    %v15 = vld [vmem:[%s1] sm:$0xff]
    %v16 = vld [vmem:[%s1 + $0x8] sm:$0xff]
    %v17 = vld [vmem:[%s1 + $0x10] sm:$0x3]
    %v18 = vlaneseq
    %v19 = vshrl.u32 %v18, 7
    %v20 = vadd.s32 %v19, 8
    %v21 = vadd.s32 %v19, 16
    %s22 = smul.u32 0, 18
    %v23 = vstv %s22
    %v24 = vadd.s32 %v19, %v23
    %v25 = vadd.s32 %v20, %v23
    %v26 = vadd.s32 %v21, %v23
    %vm27 = vcmp.lt.s32.totalorder %v24, 18
    %vm28 = vcmp.lt.s32.totalorder %v25, 18
    %vm29 = vcmp.lt.s32.totalorder %v26, 18
    %v30 = vsel %vm27, %v15, 4294967295
    %v31 = vsel %vm28, %v16, 4294967295
    %v32 = vsel %vm29, %v17, 4294967295
    %v33 = vlaneseq
    %v34 = vand.u32 %v33, 127
    %35 = vset.pattern.permute.xlu0 0
    %36 = vperm.xlu0 %35, %v30
    %v37 = vpop.permute.xlu0 %36
    %38 = vset.pattern.permute.xlu0 0
    %39 = vperm.xlu0 %38, %v31
    %v40 = vpop.permute.xlu0 %39
    %41 = vset.pattern.permute.xlu0 0
    %42 = vperm.xlu0 %41, %v32
    %v43 = vpop.permute.xlu0 %42
    %vm44 = vcmp.eq.s32.totalorder %v34, %v37
    %vm45 = vcmp.eq.s32.totalorder %v34, %v40
    %vm46 = vcmp.eq.s32.totalorder %v34, %v43
    %v47 = vsel %vm44, %v12, 0.0
    %v48 = vsel %vm45, %v13, 0.0
    %v49 = vsel %vm46, %v14, 0.0
    %vm50 = vcmask 261120
    %v51 = vsel %vm50, %v47, 0.0
    %52 = vadd.xlane.f32.xlu0 %v51
    %v53 = vpop.xlane.xlu0 %52
    %v54 = vsel %vm50, %v48, 0.0
    %55 = vadd.xlane.f32.xlu0 %v54
    %v56 = vpop.xlane.xlu0 %55
    %vm57 = vcmask 254976
    %v58 = vsel %vm57, %v49, 0.0
    %59 = vadd.xlane.f32.xlu0 %v58
    %v60 = vpop.xlane.xlu0 %59
    %vm61 = vcmask 7168
    %v62 = vsel %vm61, %v53, 0.0
    %v63 = vsel %vm61, %v56, 0.0
    %v64 = vadd.f32 %v62, %v63
    %vm65 = vcmask 1024
    %v66 = vsel %vm65, %v60, 0.0
    %v67 = vadd.f32 %v64, %v66
    %68 = vadd.xlane.f32.xlu0 %v67
    %v69 = vpop.xlane.xlu0 %68
    %v70 = vrot.slane %v69, 4
    %v71 = vadd.f32 %v69, %v70
    %v72 = vrot.slane %v71, 2
    %v73 = vadd.f32 %v71, %v72
    %v74 = vrot.slane %v73, 1
    %v75 = vadd.f32 %v73, %v74
    %s76 = vtos %v75
    %v77 = vstv %s76
    %78 = vst [vmem:[#allocation2] sm:$0x1] %v77
    // Predicated region
    $region10: #{tpu_custom_call.1} parent=1 // pred_check
      _
    $region11: #{tpu_custom_call.1} parent=1 // pred_check_branch
      %80 = sbr.rel (0) target = $region13
    $region12: #{tpu_custom_call.1} parent=1 // pred_region
      %82 = vsyncadd [#allocation3], 0
      %s84 = sshll.u32 [#allocation2], 4
      %s85 = int_to_ptr.vmem [resolvable:$true] %s84
      %s86 = sshll.u32 %s2, 4
      %s87 = int_to_ptr.hbm [resolvable:$true] %s86
      %89 = dma.vmem_to_hbm [thread:$0]  %s85, 16, %s87, [#allocation3]
    $region13: #{tpu_custom_call.1} parent=1 // pred_fallthru
      _
    // Predicated region
    $region14: #{tpu_custom_call.1} parent=1 // pred_check
      _
    $region15: #{tpu_custom_call.1} parent=1 // pred_check_branch
      %91 = sbr.rel (0) target = $region17
    $region16: #{tpu_custom_call.1} parent=1 // pred_region
      %93 = dma.done [#allocation3], 16
    $region17: #{tpu_custom_call.1} parent=1 // pred_fallthru
      _
    %94 = vsyncpa [#allocation3], 1

</llo_original>
